<compile_context>
chip_gen: v6e
topology: v6e:2x2x1
jax: 0.10.0
libtpu: 0.0.40
codegen_flags: <defaults>
</compile_context>

<pallas_src>
import jax
import jax.numpy as jnp
from jax import lax
from jax.experimental import pallas as pl
from jax.experimental.pallas import tpu as pltpu

_LANES = 128
_SUBLANES = 8
_MAX_TILE_ROWS = 4096   # (4096,128) f32 tile = 2 MiB; 2 inputs x 2 bufs = 8 MiB VMEM
_CHUNK_ROWS = 128       # in-kernel accumulation chunk (keeps live vregs small)


def _round_up(v, m):
    return -(-v // m) * m


def _sublane_align(dtype):
    # f32 -> 8 rows, bf16 -> 16 rows, int8/fp8 -> 32 rows.
    return max(_SUBLANES, 32 // jnp.dtype(dtype).itemsize)


def _plan_tiles(n, dtype):
    """Row/tile layout for a flat stream of n elements, lane width 128."""
    sub = _sublane_align(dtype)
    rows = _round_up(pl.cdiv(n, _LANES), sub)
    # Keep >= 4 tiles when there is enough work so the "parallel" grid axis can
    # feed both v7x TensorCores (harmless on 1-TC v5e/v6e).
    min_tiles = 4 if rows >= 4 * 512 else 1
    num_tiles = max(pl.cdiv(rows, _MAX_TILE_ROWS), min_tiles)
    tile_rows = pl.cdiv(rows, num_tiles)
    align = _CHUNK_ROWS if tile_rows > _CHUNK_ROWS else sub
    tile_rows = _round_up(tile_rows, align)
    chunk_rows = min(_CHUNK_ROWS, tile_rows)
    return num_tiles, tile_rows, chunk_rows


def _make_sse_kernel(tile_rows, chunk_rows):
    """Kernel: per-tile (8,128) partial of sum((x - y)^2), f32 accumulate."""
    n_chunks = tile_rows // chunk_rows

    def _chunk_sum(x, y):
        # Upcast in-register before the subtract so bf16 inputs keep f32
        # numerics; pure VPU work, reduction over the leading dim is vreg-wise.
        d = x.astype(jnp.float32) - y.astype(jnp.float32)
        sq = d * d
        return jnp.sum(
            sq.reshape(sq.shape[0] // _SUBLANES, _SUBLANES, _LANES), axis=0)

    def kernel(x_ref, y_ref, out_ref):
        if n_chunks == 1:
            out_ref[...] = _chunk_sum(x_ref[...], y_ref[...])
            return

        def body(c, acc):
            r0 = pl.multiple_of(c * chunk_rows, chunk_rows)
            xc = x_ref[pl.ds(r0, chunk_rows), :]
            yc = y_ref[pl.ds(r0, chunk_rows), :]
            return acc + _chunk_sum(xc, yc)

        acc = lax.fori_loop(
            0, n_chunks, body,
            jnp.zeros((_SUBLANES, _LANES), jnp.float32),
            unroll=True)
        out_ref[...] = acc

    return kernel


def _scale_sum_sq_err(x, y):
    """sum((x - y)^2) over all elements via a lane-dense Pallas kernel."""
    n = x.size
    num_tiles, tile_rows, chunk_rows = _plan_tiles(n, x.dtype)
    padded = num_tiles * tile_rows * _LANES

    xf = x.reshape(-1)
    yf = y.reshape(-1)
    if padded != n:
        # Ragged tail: pad BOTH streams with the same value (zero) so padded
        # elements contribute exactly 0.  No-op when n is already aligned.
        xf = jnp.pad(xf, (0, padded - n))
        yf = jnp.pad(yf, (0, padded - n))
    x2d = xf.reshape(-1, _LANES)
    y2d = yf.reshape(-1, _LANES)

    partials = pl.pallas_call(
        _make_sse_kernel(tile_rows, chunk_rows),
        out_shape=jax.ShapeDtypeStruct(
            (num_tiles * _SUBLANES, _LANES), jnp.float32),
        grid_spec=pl.GridSpec(
            grid=(num_tiles,),
            in_specs=[
                pl.BlockSpec((tile_rows, _LANES), lambda i: (i, 0)),
                pl.BlockSpec((tile_rows, _LANES), lambda i: (i, 0)),
            ],
            out_specs=pl.BlockSpec((_SUBLANES, _LANES), lambda i: (i, 0)),
        ),
        compiler_params=pltpu.CompilerParams(
            dimension_semantics=("parallel",),
        ),
    )(x2d, y2d)

    # Tiny final reduction of the per-tile lane-dense partials.
    return jnp.sum(partials)


def loss_pallas(x1, x2, x3, x4, y):
    # F.interpolate(y, size) with mode='nearest' and dims divisible by the
    # factor is exact strided slicing; chain the downsamples so the full-size
    # y is strided-read only once (y3/y4 come from the much smaller y2/y3).
    # TODO(synk): replicate PyTorch floor-index nearest sampling if H or W is
    # not divisible by 8.
    y2 = y[:, :, ::2, ::2]
    y3 = y2[:, :, ::2, ::2]
    y4 = y3[:, :, ::2, ::2]

    total = jnp.float32(0.0)
    for xs, ys in ((x1, y), (x2, y2), (x3, y3), (x4, y4)):
        assert xs.shape == ys.shape, (xs.shape, ys.shape)
        n = xs.size
        assert n > 0, "empty scale would divide by zero"
        # Per-scale 1/N applied here (wrapper-side weighting of the partials).
        total = total + _scale_sum_sq_err(xs, ys) / jnp.float32(n)
    return total


def loss_reference(x1, x2, x3, x4, y):
    y2 = y[:, :, ::2, ::2]
    y3 = y[:, :, ::4, ::4]
    y4 = y[:, :, ::8, ::8]
    return (
        jnp.mean((x1 - y) ** 2)
        + jnp.mean((x2 - y2) ** 2)
        + jnp.mean((x3 - y3) ** 2)
        + jnp.mean((x4 - y4) ** 2)
    )


if __name__ == "__main__":
    key = jax.random.PRNGKey(0)

    def make_inputs(k, b, c, h, w, dtype):
        k1, k2, k3, k4, ky = jax.random.split(k, 5)
        y = jax.random.normal(ky, (b, c, h, w), dtype=jnp.float32).astype(dtype)
        x1 = jax.random.normal(k1, (b, c, h, w), dtype=jnp.float32).astype(dtype)
        x2 = jax.random.normal(k2, (b, c, h // 2, w // 2),
                               dtype=jnp.float32).astype(dtype)
        x3 = jax.random.normal(k3, (b, c, h // 4, w // 4),
                               dtype=jnp.float32).astype(dtype)
        x4 = jax.random.normal(k4, (b, c, h // 8, w // 8),
                               dtype=jnp.float32).astype(dtype)
        return x1, x2, x3, x4, y

    loss_fn = jax.jit(loss_pallas)

    cases = [
        ((2, 4, 16, 16), jnp.float32),   # primary small case, fully aligned
        ((2, 3, 16, 16), jnp.float32),   # ragged tail -> zero-pad path
        ((2, 4, 64, 64), jnp.float32),   # multi-chunk in-kernel accumulation
        ((2, 4, 64, 64), jnp.bfloat16),  # bf16 in / f32 accumulate
    ]
    for (b, c, h, w), dtype in cases:
        key, sub = jax.random.split(key)
        args = make_inputs(sub, b, c, h, w, dtype)
        out = loss_fn(*args)
        jax.block_until_ready(out)
        ref = loss_reference(*[a.astype(jnp.float32) for a in args])
        assert jnp.allclose(out, ref, rtol=1e-5, atol=1e-5), (
            (b, c, h, w), dtype, out, ref)

    print("KERNEL_OK")
</pallas_src>

<mosaic_0001>
module attributes {stable_mosaic.version = 11 : i64} {
  func.func @kernel(%arg0: i32, %arg1: memref<16x128xf32, #tpu.memory_space<vmem>>, %arg2: memref<16x128xf32, #tpu.memory_space<vmem>>, %arg3: memref<8x128xf32, #tpu.memory_space<vmem>>) attributes {dimension_semantics = [#tpu.dimension_semantics<parallel>], iteration_bounds = array<i64: 1>, scalar_prefetch = 0 : i64, scratch_operands = 0 : i64, tpu.core_type = #tpu.core_type<tc>, window_params = [{transform_indices = @transform_0, window_bounds = array<i64: 16, 128>}, {transform_indices = @transform_1, window_bounds = array<i64: 16, 128>}, {transform_indices = @transform_2, window_bounds = array<i64: 8, 128>}]} {
    %c0 = arith.constant 0 : index
    %c0_0 = arith.constant 0 : index
    %0 = vector.load %arg1[%c0, %c0_0] : memref<16x128xf32, #tpu.memory_space<vmem>>, vector<16x128xf32>
    %c0_1 = arith.constant 0 : index
    %c0_2 = arith.constant 0 : index
    %1 = vector.load %arg2[%c0_1, %c0_2] : memref<16x128xf32, #tpu.memory_space<vmem>>, vector<16x128xf32>
    %2 = arith.subf %0, %1 : vector<16x128xf32>
    %3 = arith.mulf %2, %2 : vector<16x128xf32>
    %4 = vector.shape_cast %3 : vector<16x128xf32> to vector<2x8x128xf32>
    %cst = arith.constant dense<0.000000e+00> : vector<8x128xf32>
    %5 = vector.multi_reduction <add>, %4, %cst [0] : vector<2x8x128xf32> to vector<8x128xf32>
    %c0_3 = arith.constant 0 : index
    %c0_4 = arith.constant 0 : index
    %6 = vector.load %arg3[%c0_3, %c0_4] : memref<8x128xf32, #tpu.memory_space<vmem>>, vector<8x128xf32>
    tpu.vector_store %arg3[%c0_3, %c0_4], %5 {strides = array<i32>} : memref<8x128xf32, #tpu.memory_space<vmem>>, vector<8x128xf32>,
    return
  }
  func.func @transform_0(%arg0: i32) -> (i32, i32) {
    %c0_i32 = arith.constant 0 : i32
    %c0_i32_0 = arith.constant 0 : i32
    return %arg0, %c0_i32 : i32, i32
  }
  func.func @transform_1(%arg0: i32) -> (i32, i32) {
    %c0_i32 = arith.constant 0 : i32
    %c0_i32_0 = arith.constant 0 : i32
    return %arg0, %c0_i32 : i32, i32
  }
  func.func @transform_2(%arg0: i32) -> (i32, i32) {
    %c0_i32 = arith.constant 0 : i32
    %c0_i32_0 = arith.constant 0 : i32
    return %arg0, %c0_i32 : i32, i32
  }
}

module attributes {stable_mosaic.version = 11 : i64} {
  func.func @kernel(%arg0: i32, %arg1: memref<8x128xf32, #tpu.memory_space<vmem>>, %arg2: memref<8x128xf32, #tpu.memory_space<vmem>>, %arg3: memref<8x128xf32, #tpu.memory_space<vmem>>) attributes {dimension_semantics = [#tpu.dimension_semantics<parallel>], iteration_bounds = array<i64: 1>, scalar_prefetch = 0 : i64, scratch_operands = 0 : i64, tpu.core_type = #tpu.core_type<tc>, window_params = [{transform_indices = @transform_0, window_bounds = array<i64: 8, 128>}, {transform_indices = @transform_1, window_bounds = array<i64: 8, 128>}, {transform_indices = @transform_2, window_bounds = array<i64: 8, 128>}]} {
    %c0 = arith.constant 0 : index
    %c0_0 = arith.constant 0 : index
    %0 = vector.load %arg1[%c0, %c0_0] : memref<8x128xf32, #tpu.memory_space<vmem>>, vector<8x128xf32>
    %c0_1 = arith.constant 0 : index
    %c0_2 = arith.constant 0 : index
    %1 = vector.load %arg2[%c0_1, %c0_2] : memref<8x128xf32, #tpu.memory_space<vmem>>, vector<8x128xf32>
    %2 = arith.subf %0, %1 : vector<8x128xf32>
    %3 = arith.mulf %2, %2 : vector<8x128xf32>
    %4 = vector.shape_cast %3 : vector<8x128xf32> to vector<1x8x128xf32>
    %cst = arith.constant dense<0.000000e+00> : vector<8x128xf32>
    %5 = vector.multi_reduction <add>, %4, %cst [0] : vector<1x8x128xf32> to vector<8x128xf32>
    %c0_3 = arith.constant 0 : index
    %c0_4 = arith.constant 0 : index
    %6 = vector.load %arg3[%c0_3, %c0_4] : memref<8x128xf32, #tpu.memory_space<vmem>>, vector<8x128xf32>
    tpu.vector_store %arg3[%c0_3, %c0_4], %5 {strides = array<i32>} : memref<8x128xf32, #tpu.memory_space<vmem>>, vector<8x128xf32>,
    return
  }
  func.func @transform_0(%arg0: i32) -> (i32, i32) {
    %c0_i32 = arith.constant 0 : i32
    %c0_i32_0 = arith.constant 0 : i32
    return %arg0, %c0_i32 : i32, i32
  }
  func.func @transform_1(%arg0: i32) -> (i32, i32) {
    %c0_i32 = arith.constant 0 : i32
    %c0_i32_0 = arith.constant 0 : i32
    return %arg0, %c0_i32 : i32, i32
  }
  func.func @transform_2(%arg0: i32) -> (i32, i32) {
    %c0_i32 = arith.constant 0 : i32
    %c0_i32_0 = arith.constant 0 : i32
    return %arg0, %c0_i32 : i32, i32
  }
}

</mosaic_0001>

<llo_original>
// kernel: loss_pallas.4
$region0: #{loss_pallas.4}
  #allocation0 [shape = 'u32[]', space=smem, size = 0x4, offset = 0x4, fixed_abs, tag = 'smem constant byte address 0x4 - core index']
  #allocation1 [shape = 'u32[144,128]{1,0:T(1,128)}', space=vmem, size = 0x12000, scoped, tag = 'internal scratch']
  %s0 = inlined_call_operand.vmem [shape: f32[16,128], index: 0, kind: input, shape index: {}]
  %s1 = inlined_call_operand.vmem [shape: f32[16,128], index: 1, kind: input, shape index: {}]
  %s2 = inlined_call_operand.vmem [shape: f32[8,128], index: 2, kind: output, shape index: {}]
  %s3 = sld [smem:[#allocation0]]
  $region18: #{loss_pallas.4} parent=0
    _
  %s5 = ssub.s32 1, %s3
  %s6 = scalar_select 0, %s5, %s3
  // Predicated region
  $region2: #{loss_pallas.4} parent=0 // pred_check
    _
  $region3: #{loss_pallas.4} parent=0 // pred_check_branch
    %8 = sbr.rel (0) target = $region5
  $region4: #{loss_pallas.4} parent=0 // pred_region
    _
  $region5: #{loss_pallas.4} parent=0 // pred_fallthru
    _
  // Predicated region
  $region6: #{loss_pallas.4} parent=0 // pred_check
    _
  $region7: #{loss_pallas.4} parent=0 // pred_check_branch
    %10 = sbr.rel (0) target = $region9
  $region8: #{loss_pallas.4} parent=0 // pred_region
    _
  $region9: #{loss_pallas.4} parent=0 // pred_fallthru
    _
  %v11 = vld [vmem:[%s0] sm:$0xff]
  %v12 = vld [vmem:[%s0 + $0x8] sm:$0xff]
  %v13 = vld [vmem:[%s1] sm:$0xff]
  %v14 = vld [vmem:[%s1 + $0x8] sm:$0xff]
  %v15 = vsub.f32 %v11, %v13
  %v16 = vsub.f32 %v12, %v14
  %v17 = vmul.f32 %v15, %v15
  %v18 = vmul.f32 %v16, %v16
  %v19 = vadd.f32 %v17, %v18
  %20 = vst [vmem:[%s2] sm:$0xff] %v19
  // Predicated region
  $region10: #{loss_pallas.4} parent=0 // pred_check
    _
  $region11: #{loss_pallas.4} parent=0 // pred_check_branch
    %22 = sbr.rel (0) target = $region13
  $region12: #{loss_pallas.4} parent=0 // pred_region
    _
  $region13: #{loss_pallas.4} parent=0 // pred_fallthru
    _
  // Predicated region
  $region14: #{loss_pallas.4} parent=0 // pred_check
    _
  $region15: #{loss_pallas.4} parent=0 // pred_check_branch
    %24 = sbr.rel (0) target = $region17
  $region16: #{loss_pallas.4} parent=0 // pred_region
    _
  $region17: #{loss_pallas.4} parent=0 // pred_fallthru
    _

// kernel: loss_pallas.5
$region0: #{loss_pallas.5}
  #allocation0 [shape = 'u32[]', space=smem, size = 0x4, offset = 0x4, fixed_abs, tag = 'smem constant byte address 0x4 - core index']
  #allocation1 [shape = 'u32[144,128]{1,0:T(1,128)}', space=vmem, size = 0x12000, scoped, tag = 'internal scratch']
  %s0 = inlined_call_operand.vmem [shape: f32[8,128], index: 0, kind: input, shape index: {}]
  %s1 = inlined_call_operand.vmem [shape: f32[8,128], index: 1, kind: input, shape index: {}]
  %s2 = inlined_call_operand.vmem [shape: f32[8,128], index: 2, kind: output, shape index: {}]
  %s3 = sld [smem:[#allocation0]]
  $region18: #{loss_pallas.5} parent=0
    _
  %s5 = ssub.s32 1, %s3
  %s6 = scalar_select 0, %s5, %s3
  // Predicated region
  $region2: #{loss_pallas.5} parent=0 // pred_check
    _
  $region3: #{loss_pallas.5} parent=0 // pred_check_branch
    %8 = sbr.rel (0) target = $region5
  $region4: #{loss_pallas.5} parent=0 // pred_region
    _
  $region5: #{loss_pallas.5} parent=0 // pred_fallthru
    _
  // Predicated region
  $region6: #{loss_pallas.5} parent=0 // pred_check
    _
  $region7: #{loss_pallas.5} parent=0 // pred_check_branch
    %10 = sbr.rel (0) target = $region9
  $region8: #{loss_pallas.5} parent=0 // pred_region
    _
  $region9: #{loss_pallas.5} parent=0 // pred_fallthru
    _
  %v11 = vld [vmem:[%s0] sm:$0xff]
  %v12 = vld [vmem:[%s1] sm:$0xff]
  %v13 = vsub.f32 %v11, %v12
  %v14 = vmul.f32 %v13, %v13
  %v15 = vadd.f32 %v14, 0.0
  %16 = vst [vmem:[%s2] sm:$0xff] %v15
  // Predicated region
  $region10: #{loss_pallas.5} parent=0 // pred_check
    _
  $region11: #{loss_pallas.5} parent=0 // pred_check_branch
    %18 = sbr.rel (0) target = $region13
  $region12: #{loss_pallas.5} parent=0 // pred_region
    _
  $region13: #{loss_pallas.5} parent=0 // pred_fallthru
    _
  // Predicated region
  $region14: #{loss_pallas.5} parent=0 // pred_check
    _
  $region15: #{loss_pallas.5} parent=0 // pred_check_branch
    %20 = sbr.rel (0) target = $region17
  $region16: #{loss_pallas.5} parent=0 // pred_region
    _
  $region17: #{loss_pallas.5} parent=0 // pred_fallthru
    _

</llo_original>
